<compile_context>
chip_gen: v5e
topology: v5e:2x2
jax: 0.10.0
libtpu: 0.0.40
codegen_flags: <defaults>
</compile_context>

<pallas_src>
import jax
import jax.numpy as jnp
from jax.experimental import pallas as pl
from jax.experimental.pallas import tpu as pltpu


def _vmem_capacity_bytes():
    try:
        return int(pltpu.get_tpu_info().vmem_capacity_bytes)
    except Exception:
        return 64 * 1024 * 1024      # conservative fallback (v7x-sized)


def _round_up(x, m):
    return (x + m - 1) // m * m


def _pick_tn(N, L, itemsize, budget_bytes):
    """Rows per block: multiple of 8 (or N when N <= 8), sized to ~budget,
    and capped so the grid has >= 2 steps whenever N > 8 (v7x megacore)."""
    if N <= 8:
        return N
    lane_pad = _round_up(L, 128)
    row_bytes = max(1, lane_pad * itemsize)
    tn = (budget_bytes // row_bytes) // 8 * 8
    tn = max(8, tn)
    # Keep at least two grid steps so both v7x TensorCores get work.
    tn = min(tn, max(8, _round_up((N + 1) // 2, 8)))
    return tn


def _make_kernel(TN, N, H, W, L, has_rem):
    def kernel(m_ref, x_ref, t_ref, o_ref):
        xv = x_ref[...].astype(jnp.float32)       # (TN, L) block of planes
        tv = t_ref[...].astype(jnp.float32)

        if has_rem:
            # Partial last block: zero rows past N (OOB reads hold garbage).
            rows = jax.lax.broadcasted_iota(jnp.int32, (TN, 1), 0)
            valid = (pl.program_id(0) * TN + rows) < N
            xv = jnp.where(valid, xv, 0.0)
            tv = jnp.where(valid, tv, 0.0)

        # --- MSE partial: sum of squared error over the whole block ---------
        diff = xv - tv
        sse = jnp.sum(jnp.sum(diff * diff, axis=0, keepdims=True),
                      axis=1, keepdims=True)                          # (1, 1)

        hmask = m_ref[0:1, :]     # (1, L): lane <  (H-1)*W
        wmask = m_ref[1:2, :]     # (1, L): lane %  W != W-1

        # --- h-TV: x[h+1, w] - x[h, w] == flat[p+W] - flat[p] ---------------
        # roll brings flat[(p+W) % L] to lane p; the wrapped lanes are exactly
        # the invalid ones (p >= (H-1)*W) and are zeroed by hmask.
        dh = pltpu.roll(xv, L - W, axis=1) - xv
        htv = jnp.sum(jnp.sum(dh * dh, axis=0, keepdims=True) * hmask,
                      axis=1, keepdims=True)                          # (1, 1)

        # --- w-TV: flat[p+1] - flat[p]; invalid where p % W == W-1 ----------
        dw = pltpu.roll(xv, L - 1, axis=1) - xv
        wtv = jnp.sum(jnp.sum(dw * dw, axis=0, keepdims=True) * wmask,
                      axis=1, keepdims=True)                          # (1, 1)

        # Merge the three scalars into one (1, 1, 3) output block (single DMA).
        lane3 = jax.lax.broadcasted_iota(jnp.int32, (1, 3), 1)
        merged = (jnp.where(lane3 == 0, sse, 0.0)
                  + jnp.where(lane3 == 1, htv, 0.0)
                  + jnp.where(lane3 == 2, wtv, 0.0))
        o_ref[...] = merged[None]                                     # (1,1,3)

    return kernel


def denoise_loss(output, target, tv_weight=1.0):
    """MSE(output, target) + TVLoss(output), matching the PyTorch module."""
    B, C, H, W = output.shape
    N = B * C
    L = H * W

    x = output.reshape(N, L)          # free row-major reshape
    t = target.reshape(N, L)

    itemsize = jnp.dtype(output.dtype).itemsize
    cap = _vmem_capacity_bytes()
    # ~6 MiB blocks on 128-MiB-VMEM chips (v5e/v6e), ~4 MiB on 64-MiB (v7x).
    budget = (6 if cap >= (100 << 20) else 4) * 1024 * 1024
    TN = _pick_tn(N, L, itemsize, budget)
    G = pl.cdiv(N, TN)
    has_rem = (N % TN) != 0

    # Per-lane validity masks precomputed once (keeps iota/mod off the VALU).
    lane = jnp.arange(L, dtype=jnp.int32)
    hmask = (lane < (H - 1) * W).astype(jnp.float32)
    wmask = (lane % W != (W - 1)).astype(jnp.float32)
    masks = jnp.stack([hmask, wmask], axis=0)             # (2, L)

    # VMEM: 2 double-buffered input blocks + in-kernel f32 temporaries,
    # capped at the physical per-core capacity (64 MiB on v7x).
    lane_pad = _round_up(L, 128)
    in_block = TN * lane_pad * itemsize
    f32_block = TN * lane_pad * 4
    vmem_limit = min(cap,
                     max(32 << 20, 4 * in_block + 4 * f32_block + (8 << 20)))

    kernel = _make_kernel(TN, N, H, W, L, has_rem)

    parts = pl.pallas_call(
        kernel,
        out_shape=jax.ShapeDtypeStruct((G, 1, 3), jnp.float32),
        grid=(G,),
        in_specs=[
            pl.BlockSpec((2, L), lambda g: (0, 0)),       # masks (constant)
            pl.BlockSpec((TN, L), lambda g: (g, 0)),
            pl.BlockSpec((TN, L), lambda g: (g, 0)),
        ],
        out_specs=pl.BlockSpec((1, 1, 3), lambda g: (g, 0, 0)),
        compiler_params=pltpu.CompilerParams(
            dimension_semantics=("parallel",),
            vmem_limit_bytes=int(vmem_limit)),
    )(masks, x, t)

    totals = jnp.sum(parts[:, 0, :], axis=0)              # (3,): sse, htv, wtv

    mse_count = float(B * C * H * W)          # nn.MSELoss() -> mean over all
    count_h = float(C * (H - 1) * W)          # numel(x[:, :, 1:, :]) / B
    count_w = float(C * H * (W - 1))          # numel(x[:, :, :, 1:]) / B
    # H == 1 or W == 1 divides by zero (inf/nan) -- matches PyTorch TVLoss.

    mse = totals[0] / mse_count
    tv = (float(tv_weight) * 2.0
          * (totals[1] / count_h + totals[2] / count_w) / float(B))
    return mse + tv


def denoise_loss_ref(output, target, tv_weight=1.0):
    """Pure-JAX reference mirroring the PyTorch forward."""
    B, C, H, W = output.shape
    mse = jnp.mean((output - target) ** 2)
    count_h = C * (H - 1) * W
    count_w = C * H * (W - 1)
    h_tv = jnp.sum((output[:, :, 1:, :] - output[:, :, :-1, :]) ** 2)
    w_tv = jnp.sum((output[:, :, :, 1:] - output[:, :, :, :-1]) ** 2)
    tv = tv_weight * 2.0 * (h_tv / count_h + w_tv / count_w) / B
    return mse + tv


if __name__ == "__main__":
    key = jax.random.PRNGKey(0)
    k1, k2 = jax.random.split(key)
    B, C, H, W = 2, 4, 16, 16
    output = jax.random.normal(k1, (B, C, H, W), dtype=jnp.float32)
    target = jax.random.normal(k2, (B, C, H, W), dtype=jnp.float32)

    loss = jax.block_until_ready(denoise_loss(output, target))
    ref = jax.block_until_ready(denoise_loss_ref(output, target))

    assert jnp.allclose(loss, ref, rtol=1e-5, atol=1e-5), (loss, ref)
    print("KERNEL_OK")
</pallas_src>

<mosaic_0001>
module attributes {stable_mosaic.version = 11 : i64} {
  func.func @kernel(%arg0: i32, %arg1: memref<2x256xf32, #tpu.memory_space<vmem>>, %arg2: memref<8x256xf32, #tpu.memory_space<vmem>>, %arg3: memref<8x256xf32, #tpu.memory_space<vmem>>, %arg4: memref<1x1x3xf32, #tpu.memory_space<vmem>>) attributes {dimension_semantics = [#tpu.dimension_semantics<parallel>], iteration_bounds = array<i64: 1>, scalar_prefetch = 0 : i64, scratch_operands = 0 : i64, tpu.core_type = #tpu.core_type<tc>, window_params = [{pipeline_mode = #tpu.pipeline_mode<synchronous>, transform_indices = @transform_0, window_bounds = array<i64: 2, 256>}, {transform_indices = @transform_1, window_bounds = array<i64: 8, 256>}, {transform_indices = @transform_2, window_bounds = array<i64: 8, 256>}, {transform_indices = @transform_3, window_bounds = array<i64: 1, 1, 3>}]} {
    %c0 = arith.constant 0 : index
    %c0_0 = arith.constant 0 : index
    %0 = vector.load %arg2[%c0, %c0_0] : memref<8x256xf32, #tpu.memory_space<vmem>>, vector<8x256xf32>
    %c0_1 = arith.constant 0 : index
    %c0_2 = arith.constant 0 : index
    %1 = vector.load %arg3[%c0_1, %c0_2] : memref<8x256xf32, #tpu.memory_space<vmem>>, vector<8x256xf32>
    %2 = arith.subf %0, %1 : vector<8x256xf32>
    %3 = arith.mulf %2, %2 : vector<8x256xf32>
    %cst = arith.constant dense<0.000000e+00> : vector<256xf32>
    %4 = vector.multi_reduction <add>, %3, %cst [0] : vector<8x256xf32> to vector<256xf32>
    %5 = vector.shape_cast %4 : vector<256xf32> to vector<1x256xf32>
    %cst_3 = arith.constant dense<0.000000e+00> : vector<1xf32>
    %6 = vector.multi_reduction <add>, %5, %cst_3 [1] : vector<1x256xf32> to vector<1xf32>
    %7 = vector.shape_cast %6 : vector<1xf32> to vector<1x1xf32>
    %c0_4 = arith.constant 0 : index
    %c0_5 = arith.constant 0 : index
    %8 = vector.load %arg1[%c0_4, %c0_5] : memref<2x256xf32, #tpu.memory_space<vmem>>, vector<1x256xf32>
    %c1 = arith.constant 1 : index
    %c0_6 = arith.constant 0 : index
    %9 = vector.load %arg1[%c1, %c0_6] : memref<2x256xf32, #tpu.memory_space<vmem>>, vector<1x256xf32>
    %c240_i32 = arith.constant 240 : i32
    %10 = tpu.dynamic_rotate %0 by %c240_i32 dim 1 : vector<8x256xf32>, i32 -> vector<8x256xf32>
    %11 = arith.subf %10, %0 : vector<8x256xf32>
    %12 = arith.mulf %11, %11 : vector<8x256xf32>
    %cst_7 = arith.constant dense<0.000000e+00> : vector<256xf32>
    %13 = vector.multi_reduction <add>, %12, %cst_7 [0] : vector<8x256xf32> to vector<256xf32>
    %14 = vector.shape_cast %13 : vector<256xf32> to vector<1x256xf32>
    %15 = arith.mulf %14, %8 : vector<1x256xf32>
    %cst_8 = arith.constant dense<0.000000e+00> : vector<1xf32>
    %16 = vector.multi_reduction <add>, %15, %cst_8 [1] : vector<1x256xf32> to vector<1xf32>
    %17 = vector.shape_cast %16 : vector<1xf32> to vector<1x1xf32>
    %c255_i32 = arith.constant 255 : i32
    %18 = tpu.dynamic_rotate %0 by %c255_i32 dim 1 : vector<8x256xf32>, i32 -> vector<8x256xf32>
    %19 = arith.subf %18, %0 : vector<8x256xf32>
    %20 = arith.mulf %19, %19 : vector<8x256xf32>
    %cst_9 = arith.constant dense<0.000000e+00> : vector<256xf32>
    %21 = vector.multi_reduction <add>, %20, %cst_9 [0] : vector<8x256xf32> to vector<256xf32>
    %22 = vector.shape_cast %21 : vector<256xf32> to vector<1x256xf32>
    %23 = arith.mulf %22, %9 : vector<1x256xf32>
    %cst_10 = arith.constant dense<0.000000e+00> : vector<1xf32>
    %24 = vector.multi_reduction <add>, %23, %cst_10 [1] : vector<1x256xf32> to vector<1xf32>
    %25 = vector.shape_cast %24 : vector<1xf32> to vector<1x1xf32>
    %26 = tpu.iota {dimensions = array<i32: 1>} : vector<1x3xi32>
    %c0_i32 = arith.constant 0 : i32
    %27 = vector.broadcast %c0_i32 : i32 to vector<1x3xi32>
    %28 = arith.cmpi eq, %26, %27 : vector<1x3xi32>
    %cst_11 = arith.constant 0.000000e+00 : f32
    %29 = vector.shape_cast %7 : vector<1x1xf32> to vector<1x1xf32>
    %30 = vector.broadcast %29 : vector<1x1xf32> to vector<1x3xf32>
    %31 = vector.broadcast %cst_11 : f32 to vector<1x3xf32>
    %32 = arith.select %28, %30, %31 : vector<1x3xi1>, vector<1x3xf32>
    %c1_i32 = arith.constant 1 : i32
    %33 = vector.broadcast %c1_i32 : i32 to vector<1x3xi32>
    %34 = arith.cmpi eq, %26, %33 : vector<1x3xi32>
    %cst_12 = arith.constant 0.000000e+00 : f32
    %35 = vector.shape_cast %17 : vector<1x1xf32> to vector<1x1xf32>
    %36 = vector.broadcast %35 : vector<1x1xf32> to vector<1x3xf32>
    %37 = vector.broadcast %cst_12 : f32 to vector<1x3xf32>
    %38 = arith.select %34, %36, %37 : vector<1x3xi1>, vector<1x3xf32>
    %39 = arith.addf %32, %38 : vector<1x3xf32>
    %c2_i32 = arith.constant 2 : i32
    %40 = vector.broadcast %c2_i32 : i32 to vector<1x3xi32>
    %41 = arith.cmpi eq, %26, %40 : vector<1x3xi32>
    %cst_13 = arith.constant 0.000000e+00 : f32
    %42 = vector.shape_cast %25 : vector<1x1xf32> to vector<1x1xf32>
    %43 = vector.broadcast %42 : vector<1x1xf32> to vector<1x3xf32>
    %44 = vector.broadcast %cst_13 : f32 to vector<1x3xf32>
    %45 = arith.select %41, %43, %44 : vector<1x3xi1>, vector<1x3xf32>
    %46 = arith.addf %39, %45 : vector<1x3xf32>
    %47 = vector.shape_cast %46 : vector<1x3xf32> to vector<1x1x3xf32>
    %c0_14 = arith.constant 0 : index
    %c0_15 = arith.constant 0 : index
    %c0_16 = arith.constant 0 : index
    %48 = vector.load %arg4[%c0_14, %c0_15, %c0_16] : memref<1x1x3xf32, #tpu.memory_space<vmem>>, vector<1x1x3xf32>
    tpu.vector_store %arg4[%c0_14, %c0_15, %c0_16], %47 {strides = array<i32>} : memref<1x1x3xf32, #tpu.memory_space<vmem>>, vector<1x1x3xf32>,
    return
  }
  func.func @transform_0(%arg0: i32) -> (i32, i32) {
    %c0_i32 = arith.constant 0 : i32
    %c0_i32_0 = arith.constant 0 : i32
    %c0_i32_1 = arith.constant 0 : i32
    return %c0_i32, %c0_i32_0 : i32, i32
  }
  func.func @transform_1(%arg0: i32) -> (i32, i32) {
    %c0_i32 = arith.constant 0 : i32
    %c0_i32_0 = arith.constant 0 : i32
    return %arg0, %c0_i32 : i32, i32
  }
  func.func @transform_2(%arg0: i32) -> (i32, i32) {
    %c0_i32 = arith.constant 0 : i32
    %c0_i32_0 = arith.constant 0 : i32
    return %arg0, %c0_i32 : i32, i32
  }
  func.func @transform_3(%arg0: i32) -> (i32, i32, i32) {
    %c0_i32 = arith.constant 0 : i32
    %c0_i32_0 = arith.constant 0 : i32
    %c0_i32_1 = arith.constant 0 : i32
    return %arg0, %c0_i32, %c0_i32_0 : i32, i32, i32
  }
}

</mosaic_0001>

<llo_original>
// kernel: tpu_custom_call.1
$region0: #{tpu_custom_call.1}
  #allocation0 [shape = 'u32[]', space=smem, size = 0x4, offset = 0x4, fixed_abs, tag = 'smem constant byte address 0x4 - core index']
  #allocation1 [shape = 'u32[72,128]{1,0:T(1,128)}', space=vmem, size = 0x9000, scoped, tag = 'internal scratch']
  %s0 = inlined_call_operand.hbm [shape: f32[2,256], index: 0, kind: input, shape index: {}]
  %s1 = inlined_call_operand.hbm [shape: f32[8,256], index: 1, kind: input, shape index: {}]
  %s2 = inlined_call_operand.hbm [shape: f32[8,256], index: 2, kind: input, shape index: {}]
  %s3 = inlined_call_operand.hbm [shape: f32[1,1,3], index: 3, kind: output, shape index: {}]
  %s4 = sld [smem:[#allocation0]]
  $region34: #{tpu_custom_call.1} parent=0
    _
  %s6 = ssub.s32 1, %s4
  %s7 = scalar_select 0, %s6, %s4
  $region1: #{tpu_custom_call.1} parent=0
    #allocation2 [shape = 'u8[2048]{0}', space=vmem, size = 0x800, scoped, tag = 'input window, operand 0, single buffered']
    #allocation3 [shape = 's32[1]{0}', space=sflag, size = 0x4, scoped, tag = 'scoped memory for tpu_custom_call.1']
    #allocation4 [shape = 's32[1]{0}', space=sflag, size = 0x4, scoped, tag = 'scoped memory for tpu_custom_call.1']
    #allocation5 [shape = 'u8[8192]{0}', space=vmem, size = 0x2000, scoped, tag = 'input window, operand 1, single buffered']
    #allocation6 [shape = 's32[1]{0}', space=sflag, size = 0x4, scoped, tag = 'scoped memory for tpu_custom_call.1']
    #allocation7 [shape = 'u8[8192]{0}', space=vmem, size = 0x2000, scoped, tag = 'input window, operand 2, single buffered']
    #allocation8 [shape = 'u8[512]{0}', space=vmem, size = 0x400, scoped, tag = 'output window, operand 0, single buffered']
    %8 = vsyncpa [#allocation3], 0
    %9 = vsyncpa [#allocation6], 0
    %10 = vsyncpa [#allocation4], 0
    // Predicated region
    $region2: #{tpu_custom_call.1} parent=1 // pred_check
      _
    $region3: #{tpu_custom_call.1} parent=1 // pred_check_branch
      %12 = sbr.rel (0) target = $region5
    $region4: #{tpu_custom_call.1} parent=1 // pred_region
      %14 = vsyncadd [#allocation3], 0
      %s16 = sshll.u32 %s0, 4
      %s17 = int_to_ptr.hbm [resolvable:$true] %s16
      %s18 = sshll.u32 [#allocation2], 4
      %s19 = int_to_ptr.vmem [resolvable:$true] %s18
      %21 = dma.hbm_to_vmem [thread:$0]  %s17, 64, %s19, [#allocation3]
    $region5: #{tpu_custom_call.1} parent=1 // pred_fallthru
      _
    // Predicated region
    $region6: #{tpu_custom_call.1} parent=1 // pred_check
      _
    $region7: #{tpu_custom_call.1} parent=1 // pred_check_branch
      %23 = sbr.rel (0) target = $region9
    $region8: #{tpu_custom_call.1} parent=1 // pred_region
      %25 = vsyncadd [#allocation6], 0
      %s27 = sshll.u32 %s1, 4
      %s28 = int_to_ptr.hbm [resolvable:$true] %s27
      %s29 = sshll.u32 [#allocation5], 4
      %s30 = int_to_ptr.vmem [resolvable:$true] %s29
      %32 = dma.hbm_to_vmem [thread:$0]  %s28, 256, %s30, [#allocation6]
    $region9: #{tpu_custom_call.1} parent=1 // pred_fallthru
      _
    // Predicated region
    $region10: #{tpu_custom_call.1} parent=1 // pred_check
      _
    $region11: #{tpu_custom_call.1} parent=1 // pred_check_branch
      %34 = sbr.rel (0) target = $region13
    $region12: #{tpu_custom_call.1} parent=1 // pred_region
      %36 = vsyncadd [#allocation6], 0
      %s38 = sshll.u32 %s2, 4
      %s39 = int_to_ptr.hbm [resolvable:$true] %s38
      %s40 = sshll.u32 [#allocation7], 4
      %s41 = int_to_ptr.vmem [resolvable:$true] %s40
      %43 = dma.hbm_to_vmem [thread:$0]  %s39, 256, %s41, [#allocation6]
    $region13: #{tpu_custom_call.1} parent=1 // pred_fallthru
      _
    // Predicated region
    $region14: #{tpu_custom_call.1} parent=1 // pred_check
      _
    $region15: #{tpu_custom_call.1} parent=1 // pred_check_branch
      %45 = sbr.rel (0) target = $region17
    $region16: #{tpu_custom_call.1} parent=1 // pred_region
      %47 = dma.done [#allocation3], 64
    $region17: #{tpu_custom_call.1} parent=1 // pred_fallthru
      _
    // Predicated region
    $region18: #{tpu_custom_call.1} parent=1 // pred_check
      _
    $region19: #{tpu_custom_call.1} parent=1 // pred_check_branch
      %49 = sbr.rel (0) target = $region21
    $region20: #{tpu_custom_call.1} parent=1 // pred_region
      %51 = dma.done [#allocation6], 256
    $region21: #{tpu_custom_call.1} parent=1 // pred_fallthru
      _
    // Predicated region
    $region22: #{tpu_custom_call.1} parent=1 // pred_check
      _
    $region23: #{tpu_custom_call.1} parent=1 // pred_check_branch
      %53 = sbr.rel (0) target = $region25
    $region24: #{tpu_custom_call.1} parent=1 // pred_region
      %55 = dma.done [#allocation6], 256
    $region25: #{tpu_custom_call.1} parent=1 // pred_fallthru
      _
    %v56 = vld [vmem:[#allocation5] sm:$0xff]
    %v57 = vld [vmem:[#allocation5 + $0x8] sm:$0xff]
    %v58 = vld [vmem:[#allocation7] sm:$0xff]
    %v59 = vld [vmem:[#allocation7 + $0x8] sm:$0xff]
    %v60 = vsub.f32 %v56, %v58
    %v61 = vsub.f32 %v57, %v59
    %v62 = vmul.f32 %v60, %v60
    %v63 = vmul.f32 %v61, %v61
    %v64 = vrot.slane %v62, 4
    %v65 = vadd.f32 %v62, %v64
    %v66 = vrot.slane %v65, 2
    %v67 = vadd.f32 %v65, %v66
    %v68 = vrot.slane %v67, 1
    %v69 = vadd.f32 %v67, %v68
    %v70 = vrot.slane %v63, 4
    %v71 = vadd.f32 %v63, %v70
    %v72 = vrot.slane %v71, 2
    %v73 = vadd.f32 %v71, %v72
    %v74 = vrot.slane %v73, 1
    %v75 = vadd.f32 %v73, %v74
    %v76 = vadd.f32 %v69, %v75
    %77 = vadd.xlane.f32.xlu0 %v76
    %v78 = vpop.xlane.xlu0 %77
    %v79 = vld [vmem:[#allocation2] ss:$2 sm:$0x3]
    %s80 = scalar_lea.vmem [#allocation2], 1
    %v81 = vld [vmem:[%s80] ss:$2 sm:$0x3]
    %82 = vrot.lane.b32.xlu0 %v56, 112
    %v83 = vpop.permute.xlu0 %82
    %84 = vrot.lane.b32.xlu0 %v57, 112
    %v85 = vpop.permute.xlu0 %84
    %v86 = vlaneseq
    %v87 = vand.u32 %v86, 127
    %vm88 = vcmp.lt.s32.totalorder %v87, 112
    %v89 = vsel %vm88, %v83, %v85
    %v90 = vsel %vm88, %v85, %v83
    %v91 = vsub.f32 %v89, %v56
    %v92 = vsub.f32 %v90, %v57
    %v93 = vmul.f32 %v91, %v91
    %v94 = vmul.f32 %v92, %v92
    %v95 = vrot.slane %v93, 4
    %v96 = vadd.f32 %v93, %v95
    %v97 = vrot.slane %v96, 2
    %v98 = vadd.f32 %v96, %v97
    %v99 = vrot.slane %v98, 1
    %v100 = vadd.f32 %v98, %v99
    %v101 = vrot.slane %v94, 4
    %v102 = vadd.f32 %v94, %v101
    %v103 = vrot.slane %v102, 2
    %v104 = vadd.f32 %v102, %v103
    %v105 = vrot.slane %v104, 1
    %v106 = vadd.f32 %v104, %v105
    %v108 = vperm.slane %v79, 0
    %v109 = vperm.slane %v79, 1
    %v112 = vmul.f32 %v100, %v108
    %v113 = vmul.f32 %v106, %v109
    %vm114 = vcmask 1040384
    %v115 = vsel %vm114, %v112, 0.0
    %v116 = vsel %vm114, %v113, 0.0
    %v117 = vadd.f32 %v115, %v116
    %118 = vadd.xlane.f32.xlu0 %v117
    %v119 = vpop.xlane.xlu0 %118
    %120 = vrot.lane.b32.xlu0 %v56, 127
    %v121 = vpop.permute.xlu0 %120
    %122 = vrot.lane.b32.xlu0 %v57, 127
    %v123 = vpop.permute.xlu0 %122
    %vm124 = vcmp.lt.s32.totalorder %v87, 127
    %v125 = vsel %vm124, %v121, %v123
    %v126 = vsel %vm124, %v123, %v121
    %v127 = vsub.f32 %v125, %v56
    %v128 = vsub.f32 %v126, %v57
    %v129 = vmul.f32 %v127, %v127
    %v130 = vmul.f32 %v128, %v128
    %v131 = vrot.slane %v129, 4
    %v132 = vadd.f32 %v129, %v131
    %v133 = vrot.slane %v132, 2
    %v134 = vadd.f32 %v132, %v133
    %v135 = vrot.slane %v134, 1
    %v136 = vadd.f32 %v134, %v135
    %v137 = vrot.slane %v130, 4
    %v138 = vadd.f32 %v130, %v137
    %v139 = vrot.slane %v138, 2
    %v140 = vadd.f32 %v138, %v139
    %v141 = vrot.slane %v140, 1
    %v142 = vadd.f32 %v140, %v141
    %v144 = vperm.slane %v81, 0
    %v145 = vperm.slane %v81, 1
    %v148 = vmul.f32 %v136, %v144
    %v149 = vmul.f32 %v142, %v145
    %v150 = vsel %vm114, %v148, 0.0
    %v151 = vsel %vm114, %v149, 0.0
    %v152 = vadd.f32 %v150, %v151
    %153 = vadd.xlane.f32.xlu0 %v152
    %v154 = vpop.xlane.xlu0 %153
    %vm155 = vcmp.eq.s32.totalorder %v87, 0
    %v156 = vsel %vm155, %v78, 0.0
    %vm157 = vcmp.eq.s32.totalorder %v87, 1
    %v158 = vsel %vm157, %v119, 0.0
    %v159 = vadd.f32 %v156, %v158
    %vm160 = vcmp.eq.s32.totalorder %v87, 2
    %v161 = vsel %vm160, %v154, 0.0
    %v162 = vadd.f32 %v159, %v161
    %vm163 = vcmask 16384
    %164 = vst.msk [vmem:[#allocation8] sm:$0x1] %vm163, %v162
    // Predicated region
    $region26: #{tpu_custom_call.1} parent=1 // pred_check
      _
    $region27: #{tpu_custom_call.1} parent=1 // pred_check_branch
      %166 = sbr.rel (0) target = $region29
    $region28: #{tpu_custom_call.1} parent=1 // pred_region
      %168 = vsyncadd [#allocation4], 0
      %s170 = sshll.u32 [#allocation8], 4
      %s171 = int_to_ptr.vmem [resolvable:$true] %s170
      %s172 = sshll.u32 %s3, 4
      %s173 = int_to_ptr.hbm [resolvable:$true] %s172
      %175 = dma.vmem_to_hbm [thread:$0]  %s171, 16, %s173, [#allocation4]
    $region29: #{tpu_custom_call.1} parent=1 // pred_fallthru
      _
    // Predicated region
    $region30: #{tpu_custom_call.1} parent=1 // pred_check
      _
    $region31: #{tpu_custom_call.1} parent=1 // pred_check_branch
      %177 = sbr.rel (0) target = $region33
    $region32: #{tpu_custom_call.1} parent=1 // pred_region
      %179 = dma.done [#allocation4], 16
    $region33: #{tpu_custom_call.1} parent=1 // pred_fallthru
      _
    %180 = vsyncpa [#allocation3], 1
    %181 = vsyncpa [#allocation6], 1
    %182 = vsyncpa [#allocation4], 1

</llo_original>
